<compile_context>
chip_gen: v5e
topology: v5e:2x2
jax: 0.10.0
libtpu: 0.0.40
codegen_flags: <defaults>
</compile_context>

<pallas_src>
import functools

import jax
import jax.numpy as jnp
from jax.experimental import pallas as pl
from jax.experimental.pallas import tpu as pltpu


def _ln_kernel_plain(gamma_ref, beta_ref, x_ref, o_ref, *, epsilon, inv_dm1):
    """LayerNorm tile kernel; reduction along the minor (lane) axis."""
    x = x_ref[...].astype(jnp.float32)                      # (tm, d)
    mean = jnp.mean(x, axis=-1, keepdims=True)              # (tm, 1)
    diff = x - mean
    var = jnp.sum(diff * diff, axis=-1, keepdims=True) * jnp.float32(inv_dm1)
    # eps added to std (not var), unbiased var: exactly the torch module.
    inv = pl.reciprocal(jnp.sqrt(var) + jnp.float32(epsilon), approx=False)
    scale = gamma_ref[0].astype(jnp.float32) * inv          # (tm, 1)
    o_ref[...] = (diff * scale + beta_ref[0].astype(jnp.float32)).astype(o_ref.dtype)


def _ln_kernel_packed(gamma_ref, beta_ref, ind_ref, x_ref, o_ref, *,
                      epsilon, d, inv_dm1):
    """Lane-dense LayerNorm: k = 128//d logical rows per 128-wide physical row.

    Per-row reductions are segmented sums along lanes, done as one MXU matmul
    against a constant (P, P) block-diagonal 0/1 matrix; the result is already
    broadcast back across each segment, so elementwise work stays lane-dense.
    """
    x = x_ref[...].astype(jnp.float32)                      # (tm, P)
    ind = ind_ref[...]                                      # (P, P) f32 0/1
    sums = jnp.dot(x, ind, precision=jax.lax.Precision.HIGHEST,
                   preferred_element_type=jnp.float32)      # segment sums, bcast
    mean = sums * jnp.float32(1.0 / d)
    diff = x - mean
    ssq = jnp.dot(diff * diff, ind, precision=jax.lax.Precision.HIGHEST,
                  preferred_element_type=jnp.float32)
    var = ssq * jnp.float32(inv_dm1)
    inv = pl.reciprocal(jnp.sqrt(var) + jnp.float32(epsilon), approx=False)
    scale = gamma_ref[0].astype(jnp.float32) * inv
    o_ref[...] = (diff * scale + beta_ref[0].astype(jnp.float32)).astype(o_ref.dtype)


def layer_normalization(x, gamma, beta, *, epsilon=1e-6):
    """Pallas LayerNormalization. x: (..., D); gamma, beta: shape (1,)."""
    orig_shape = x.shape
    d = orig_shape[-1]
    x2d = x.reshape(-1, d)
    m = x2d.shape[0]

    # torch .std() is unbiased; d == 1 gives NaN in torch -> reproduce.
    inv_dm1 = (1.0 / (d - 1)) if d > 1 else float("nan")

    itemsize = jnp.dtype(x.dtype).itemsize
    pack = max(8, 32 // itemsize)          # sublane packing of the row axis

    # Lane-dense packing factor: fold k rows into one 128-wide physical row.
    lanes = 128
    if d < lanes and lanes % d == 0 and m % (lanes // d) == 0:
        k = lanes // d
    else:
        k = 1                              # d >= 128 (already lane-dense) or ragged
    p = k * d                              # physical row width
    mp = m // k                            # physical rows
    x_p = x2d.reshape(mp, p)               # contiguous -> free reshape

    # Row tile sized by input-dtype HBM bytes per grid step (~3 MiB), so the
    # ~0.35 us step overhead is amortized and bf16 gets 2x rows per step.
    tile_budget_bytes = 3 * 1024 * 1024
    if mp <= pack:
        tm = mp                            # single full-extent block
    else:
        tm = max(pack, (tile_budget_bytes // (itemsize * p)) // pack * pack)
        # Keep >= 2 grid steps so ("parallel",) can use both v7x TensorCores.
        half = pl.cdiv(pl.cdiv(mp, 2), pack) * pack
        tm = max(pack, min(tm, half))
    grid = (pl.cdiv(mp, tm),)

    args = [gamma, beta]
    in_specs = [pl.BlockSpec(memory_space=pltpu.SMEM),        # gamma (1,)
                pl.BlockSpec(memory_space=pltpu.SMEM)]        # beta  (1,)
    if k > 1:
        seg = jnp.arange(p, dtype=jnp.int32) // d
        ind = (seg[:, None] == seg[None, :]).astype(jnp.float32)   # (P, P) 0/1
        args.append(ind)
        in_specs.append(pl.BlockSpec((p, p), lambda i: (0, 0)))    # VMEM-resident
        kernel = functools.partial(_ln_kernel_packed, epsilon=epsilon, d=d,
                                   inv_dm1=inv_dm1)
    else:
        kernel = functools.partial(_ln_kernel_plain, epsilon=epsilon,
                                   inv_dm1=inv_dm1)
    args.append(x_p)
    in_specs.append(pl.BlockSpec((tm, p), lambda i: (i, 0)))

    out = pl.pallas_call(
        kernel,
        out_shape=jax.ShapeDtypeStruct((mp, p), x.dtype),
        grid=grid,
        in_specs=in_specs,
        out_specs=pl.BlockSpec((tm, p), lambda i: (i, 0)),
        compiler_params=pltpu.CompilerParams(
            dimension_semantics=("parallel",),
            vmem_limit_bytes=40 * 1024 * 1024,
        ),
    )(*args)

    return out.reshape(orig_shape)


def _reference(x, gamma, beta, epsilon=1e-6):
    x32 = x.astype(jnp.float32)
    mean = jnp.mean(x32, axis=-1, keepdims=True)
    std = jnp.std(x32, axis=-1, keepdims=True, ddof=1)   # unbiased, like torch
    return (gamma[0] * (x32 - mean) / (std + epsilon) + beta[0]).astype(x.dtype)


if __name__ == "__main__":
    key = jax.random.PRNGKey(0)
    gamma = jnp.ones((1,), dtype=jnp.float32)
    beta = jnp.ones((1,), dtype=jnp.float32)

    # Main demo: batch=4, seq=16, hidden=32 -> exercises the lane-dense packed
    # path (k=4 rows per 128-wide physical row) and a 2-step "parallel" grid.
    x = jax.random.normal(key, (4, 16, 32), dtype=jnp.float32)
    out = jax.block_until_ready(layer_normalization(x, gamma, beta, epsilon=1e-6))
    assert out.shape == x.shape
    assert jnp.allclose(out, _reference(x, gamma, beta), atol=1e-5, rtol=1e-5)

    # Secondary checks (quiet): plain path with lane-multiple D, and a ragged
    # row count exercising a partial last block.
    x2 = jax.random.normal(jax.random.PRNGKey(1), (2, 8, 128), dtype=jnp.float32)
    o2 = jax.block_until_ready(layer_normalization(x2, gamma, beta, epsilon=1e-6))
    assert jnp.allclose(o2, _reference(x2, gamma, beta), atol=1e-5, rtol=1e-5)

    x3 = jax.random.normal(jax.random.PRNGKey(2), (3, 5, 32), dtype=jnp.float32)
    o3 = jax.block_until_ready(layer_normalization(x3, gamma, beta, epsilon=1e-6))
    assert jnp.allclose(o3, _reference(x3, gamma, beta), atol=1e-5, rtol=1e-5)

    print("KERNEL_OK")
</pallas_src>

<mosaic_0001>
module attributes {stable_mosaic.version = 11 : i64} {
  func.func @_ln_kernel_packed(%arg0: i32, %arg1: memref<1xf32, #tpu.memory_space<smem>>, %arg2: memref<1xf32, #tpu.memory_space<smem>>, %arg3: memref<128x128xf32, #tpu.memory_space<vmem>>, %arg4: memref<8x128xf32, #tpu.memory_space<vmem>>, %arg5: memref<8x128xf32, #tpu.memory_space<vmem>>) attributes {dimension_semantics = [#tpu.dimension_semantics<parallel>], iteration_bounds = array<i64: 2>, scalar_prefetch = 0 : i64, scratch_operands = 0 : i64, tpu.core_type = #tpu.core_type<tc>, window_params = [{transform_indices = @transform_0, window_bounds = array<i64: 1>}, {transform_indices = @transform_1, window_bounds = array<i64: 1>}, {pipeline_mode = #tpu.pipeline_mode<synchronous>, transform_indices = @transform_2, window_bounds = array<i64: 128, 128>}, {transform_indices = @transform_3, window_bounds = array<i64: 8, 128>}, {transform_indices = @transform_4, window_bounds = array<i64: 8, 128>}]} {
    %c0 = arith.constant 0 : index
    %c0_0 = arith.constant 0 : index
    %0 = vector.load %arg4[%c0, %c0_0] : memref<8x128xf32, #tpu.memory_space<vmem>>, vector<8x128xf32>
    %c0_1 = arith.constant 0 : index
    %c0_2 = arith.constant 0 : index
    %1 = vector.load %arg3[%c0_1, %c0_2] : memref<128x128xf32, #tpu.memory_space<vmem>>, vector<128x128xf32>
    %cst = arith.constant dense<0.000000e+00> : vector<8x128xf32>
    %2 = tpu.matmul %0, %1, %cst {dimension_numbers = #tpu.dot_dimension_numbers<[1], [0], [0], [1], [0, 0, 1, 1], [], []>, precision = #tpu.contract_precision<fp32>} : vector<8x128xf32>, vector<128x128xf32>, vector<8x128xf32> -> vector<8x128xf32>
    %cst_3 = arith.constant 3.125000e-02 : f32
    %3 = vector.broadcast %cst_3 : f32 to vector<8x128xf32>
    %4 = arith.mulf %2, %3 : vector<8x128xf32>
    %5 = arith.subf %0, %4 : vector<8x128xf32>
    %6 = arith.mulf %5, %5 : vector<8x128xf32>
    %cst_4 = arith.constant dense<0.000000e+00> : vector<8x128xf32>
    %7 = tpu.matmul %6, %1, %cst_4 {dimension_numbers = #tpu.dot_dimension_numbers<[1], [0], [0], [1], [0, 0, 1, 1], [], []>, precision = #tpu.contract_precision<fp32>} : vector<8x128xf32>, vector<128x128xf32>, vector<8x128xf32> -> vector<8x128xf32>
    %cst_5 = arith.constant 0.0322580636 : f32
    %8 = vector.broadcast %cst_5 : f32 to vector<8x128xf32>
    %9 = arith.mulf %7, %8 : vector<8x128xf32>
    %10 = math.sqrt %9 : vector<8x128xf32>
    %cst_6 = arith.constant 9.99999997E-7 : f32
    %11 = vector.broadcast %cst_6 : f32 to vector<8x128xf32>
    %12 = arith.addf %10, %11 : vector<8x128xf32>
    %13 = tpu.reciprocal %12 : vector<8x128xf32> -> vector<8x128xf32>
    %c0_7 = arith.constant 0 : index
    %14 = memref.load %arg1[%c0_7] : memref<1xf32, #tpu.memory_space<smem>>
    %15 = vector.broadcast %14 : f32 to vector<8x128xf32>
    %16 = arith.mulf %15, %13 : vector<8x128xf32>
    %17 = arith.mulf %5, %16 : vector<8x128xf32>
    %c0_8 = arith.constant 0 : index
    %18 = memref.load %arg2[%c0_8] : memref<1xf32, #tpu.memory_space<smem>>
    %19 = vector.broadcast %18 : f32 to vector<8x128xf32>
    %20 = arith.addf %17, %19 : vector<8x128xf32>
    %c0_9 = arith.constant 0 : index
    %c0_10 = arith.constant 0 : index
    %21 = vector.load %arg5[%c0_9, %c0_10] : memref<8x128xf32, #tpu.memory_space<vmem>>, vector<8x128xf32>
    tpu.vector_store %arg5[%c0_9, %c0_10], %20 {strides = array<i32>} : memref<8x128xf32, #tpu.memory_space<vmem>>, vector<8x128xf32>,
    return
  }
  func.func @transform_0(%arg0: i32) -> i32 {
    %c0_i32 = arith.constant 0 : i32
    %c0_i32_0 = arith.constant 0 : i32
    return %c0_i32 : i32
  }
  func.func @transform_1(%arg0: i32) -> i32 {
    %c0_i32 = arith.constant 0 : i32
    %c0_i32_0 = arith.constant 0 : i32
    return %c0_i32 : i32
  }
  func.func @transform_2(%arg0: i32) -> (i32, i32) {
    %c0_i32 = arith.constant 0 : i32
    %c0_i32_0 = arith.constant 0 : i32
    %c0_i32_1 = arith.constant 0 : i32
    return %c0_i32, %c0_i32_0 : i32, i32
  }
  func.func @transform_3(%arg0: i32) -> (i32, i32) {
    %c0_i32 = arith.constant 0 : i32
    %c0_i32_0 = arith.constant 0 : i32
    return %arg0, %c0_i32 : i32, i32
  }
  func.func @transform_4(%arg0: i32) -> (i32, i32) {
    %c0_i32 = arith.constant 0 : i32
    %c0_i32_0 = arith.constant 0 : i32
    return %arg0, %c0_i32 : i32, i32
  }
}

</mosaic_0001>

<llo_original>
// kernel: tpu_custom_call.1
$region0: #{tpu_custom_call.1}
  #allocation0 [shape = 'u32[]', space=smem, size = 0x4, offset = 0x4, fixed_abs, tag = 'smem constant byte address 0x4 - core index']
  #allocation1 [shape = 'u32[72,128]{1,0:T(1,128)}', space=vmem, size = 0x9000, scoped, tag = 'internal scratch']
  #allocation2 [shape = 'f32[1]{0:T(128)S(6)}', space=smem, size = 0x200, scoped, tag = 'scoped memory for tpu_custom_call.1']
  #allocation3 [shape = 'f32[1]{0:T(128)S(6)}', space=smem, size = 0x200, scoped, tag = 'scoped memory for tpu_custom_call.1']
  %s0 = inlined_call_operand.<no memory space> [shape: f32[1], index: 0, kind: input, shape index: {}]
  %s1 = inlined_call_operand.<no memory space> [shape: f32[1], index: 1, kind: input, shape index: {}]
  %s2 = inlined_call_operand.hbm [shape: f32[128,128], index: 2, kind: input, shape index: {}]
  %s3 = inlined_call_operand.hbm [shape: f32[16,128], index: 3, kind: input, shape index: {}]
  %s4 = inlined_call_operand.hbm [shape: f32[16,128], index: 4, kind: output, shape index: {}]
  %s5 = sld [smem:[#allocation0]]
  $region57: #{tpu_custom_call.1} parent=0
    _
  %s7 = ssub.s32 1, %s5
  %s8 = scalar_select 0, %s7, %s5
  %9 = sst [smem:[#allocation2]] %s0
  %10 = sst [smem:[#allocation3]] %s1
  $region1: #{tpu_custom_call.1} parent=0
    #allocation4 [shape = 'u8[65536]{0}', space=vmem, size = 0x10000, scoped, tag = 'input window, operand 2, single buffered']
    #allocation5 [shape = 's32[2]{0}', space=sflag, size = 0x8, scoped, tag = 'scoped memory for tpu_custom_call.1']
    #allocation6 [shape = 's32[2]{0}', space=sflag, size = 0x8, scoped, tag = 'scoped memory for tpu_custom_call.1']
    #allocation7 [shape = 'u8[8192]{0}', space=vmem, size = 0x2000, scoped, tag = 'input window, operand 3']
    #allocation8 [shape = 's32[2]{0}', space=sflag, size = 0x8, scoped, tag = 'scoped memory for tpu_custom_call.1']
    #allocation9 [shape = 'u8[8192]{0}', space=vmem, size = 0x2000, scoped, tag = 'output window, operand 0']
    %11 = vsyncpa [#allocation5], 0
    %12 = vsyncpa [#allocation8], 0
    %s13 = scalar_lea.sflag [#allocation8], 1
    %14 = vsyncpa %s13, 0
    %15 = vsyncpa [#allocation6], 0
    %s16 = scalar_lea.sflag [#allocation6], 1
    %17 = vsyncpa %s16, 0
    loop: start=0, step=1, limit=4
    $region2: #{tpu_custom_call.1} parent=1 // loop_pre_header
      _
    $region3: #{tpu_custom_call.1} parent=1 // loop_header
      %s19 = sphi 0, %s23
      %p20 = scmp.ge.s32.totalorder %s19, 4
      %s27 = sphi 0, %s27
      %s29 = sphi 0, %s27
      %s30 = sphi 0, %s29
      %s44 = sphi 0, %s30
      %s48 = sphi 0, %s48
      %s50 = sphi 0, %s48
      %s51 = sphi 0, %s50
      %s65 = sphi 0, %s51
      %s69 = sphi 0, %s69
      %s71 = sphi 0, %s69
      %s72 = sphi 0, %s71
      %s86 = sphi 0, %s72
      %s92 = sphi 0, %s94
      %s95 = sphi 0, %s92
      %s96 = sphi 0, %s95
      %s112 = sphi 0, %s96
      %s118 = sphi 0, %s120
      %s121 = sphi 0, %s118
      %s122 = sphi 0, %s121
      %s138 = sphi 0, %s122
    $region4: #{tpu_custom_call.1} parent=1 // loop_header_branch
      %22 = sbr.rel (%p20) target = $region8
    $region5: #{tpu_custom_call.1} parent=1 // loop_body
      %s24 = ssub.s32 %s19, 1
      %s25 = ssub.s32 %s19, 2
      %s26 = sadd.s32 %s19, 1
      %s28 = sadd.s32 %s27, 1
      %p31 = scmp.eq.s32.totalorder %s19, 1
      %p32 = scmp.ne.s32.totalorder %s27, %s29
      %p33 = scmp.eq.s32.totalorder %s19, 0
      %p34 = por %p32, %p33
      %p35 = scmp.ne.s32.totalorder %s27, %s29
      %p36 = scmp.eq.s32.totalorder %s24, 1
      %p37 = por %p35, %p36
      %p38 = scmp.ne.s32.totalorder %s29, %s30
      %p39 = scmp.eq.s32.totalorder %s24, 0
      %p40 = por %p38, %p39
      %p41 = scmp.ne.s32.totalorder %s29, %s30
      %p42 = scmp.eq.s32.totalorder %s25, 1
      %p43 = por %p41, %p42
      %p45 = scmp.ne.s32.totalorder %s30, %s44
      %p46 = scmp.eq.s32.totalorder %s25, 0
      %p47 = por %p45, %p46
      %s49 = sadd.s32 %s48, 1
      %p52 = scmp.eq.s32.totalorder %s19, 1
      %p53 = scmp.ne.s32.totalorder %s48, %s50
      %p54 = scmp.eq.s32.totalorder %s19, 0
      %p55 = por %p53, %p54
      %p56 = scmp.ne.s32.totalorder %s48, %s50
      %p57 = scmp.eq.s32.totalorder %s24, 1
      %p58 = por %p56, %p57
      %p59 = scmp.ne.s32.totalorder %s50, %s51
      %p60 = scmp.eq.s32.totalorder %s24, 0
      %p61 = por %p59, %p60
      %p62 = scmp.ne.s32.totalorder %s50, %s51
      %p63 = scmp.eq.s32.totalorder %s25, 1
      %p64 = por %p62, %p63
      %p66 = scmp.ne.s32.totalorder %s51, %s65
      %p67 = scmp.eq.s32.totalorder %s25, 0
      %p68 = por %p66, %p67
      %s70 = sadd.s32 %s69, 1
      %p73 = scmp.eq.s32.totalorder %s19, 1
      %p74 = scmp.ne.s32.totalorder %s69, %s71
      %p75 = scmp.eq.s32.totalorder %s19, 0
      %p76 = por %p74, %p75
      %p77 = scmp.ne.s32.totalorder %s69, %s71
      %p78 = scmp.eq.s32.totalorder %s24, 1
      %p79 = por %p77, %p78
      %p80 = scmp.ne.s32.totalorder %s71, %s72
      %p81 = scmp.eq.s32.totalorder %s24, 0
      %p82 = por %p80, %p81
      %p83 = scmp.ne.s32.totalorder %s71, %s72
      %p84 = scmp.eq.s32.totalorder %s25, 1
      %p85 = por %p83, %p84
      %p87 = scmp.ne.s32.totalorder %s72, %s86
      %p88 = scmp.eq.s32.totalorder %s25, 0
      %p89 = por %p87, %p88
      %s90 = ssub.s32 %s19, %s26
      %p91 = scmp.eq.s32.totalorder %s90, 0
      %s93 = sadd.s32 %s92, 1
      %s94 = scalar_select %p91, %s92, %s93
      %p97 = pneg %p91
      %p98 = scmp.eq.s32.totalorder %s19, 1
      %p99 = por %p97, %p98
      %p100 = scmp.ne.s32.totalorder %s92, %s95
      %p101 = scmp.eq.s32.totalorder %s19, 0
      %p102 = por %p100, %p101
      %p103 = scmp.ne.s32.totalorder %s92, %s95
      %p104 = scmp.eq.s32.totalorder %s24, 1
      %p105 = por %p103, %p104
      %p106 = scmp.ne.s32.totalorder %s95, %s96
      %p107 = scmp.eq.s32.totalorder %s24, 0
      %p108 = por %p106, %p107
      %p109 = scmp.ne.s32.totalorder %s95, %s96
      %p110 = scmp.eq.s32.totalorder %s25, 1
      %p111 = por %p109, %p110
      %p113 = scmp.ne.s32.totalorder %s96, %s112
      %p114 = scmp.eq.s32.totalorder %s25, 0
      %p115 = por %p113, %p114
      %s116 = ssub.s32 %s19, %s26
      %p117 = scmp.eq.s32.totalorder %s116, 0
      %s119 = sadd.s32 %s118, 1
      %s120 = scalar_select %p117, %s118, %s119
      %p123 = pneg %p117
      %p124 = scmp.eq.s32.totalorder %s19, 1
      %p125 = por %p123, %p124
      %p126 = scmp.ne.s32.totalorder %s118, %s121
      %p127 = scmp.eq.s32.totalorder %s19, 0
      %p128 = por %p126, %p127
      %p129 = scmp.ne.s32.totalorder %s118, %s121
      %p130 = scmp.eq.s32.totalorder %s24, 1
      %p131 = por %p129, %p130
      %p132 = scmp.ne.s32.totalorder %s121, %s122
      %p133 = scmp.eq.s32.totalorder %s24, 0
      %p134 = por %p132, %p133
      %p135 = scmp.ne.s32.totalorder %s121, %s122
      %p136 = scmp.eq.s32.totalorder %s25, 1
      %p137 = por %p135, %p136
      %p139 = scmp.ne.s32.totalorder %s122, %s138
      %p140 = scmp.eq.s32.totalorder %s25, 0
      %p141 = por %p139, %p140
      %p142 = scmp.le.s32.totalorder 1, %s19
      %p143 = scmp.lt.s32.totalorder %s19, 3
      %p144 = pnand %p142, %p143
      %p145 = pneg %p144
      // Predicated region
      $region9: #{tpu_custom_call.1} parent=5 // pred_check
        _
      $region10: #{tpu_custom_call.1} parent=5 // pred_check_branch
        %147 = sbr.rel (%p144) target = $region12
      $region11: #{tpu_custom_call.1} parent=5 // pred_region
        %s148 = ssub.s32 %s19, 1
        // Predicated region
        $region13: #{tpu_custom_call.1} parent=11 // pred_check
          %p149 = pneg %p40
        $region14: #{tpu_custom_call.1} parent=11 // pred_check_branch
          %151 = sbr.rel (%p149) target = $region16
        $region15: #{tpu_custom_call.1} parent=11 // pred_region
          _
        $region16: #{tpu_custom_call.1} parent=11 // pred_fallthru
          _
        // Predicated region
        $region17: #{tpu_custom_call.1} parent=11 // pred_check
          %p152 = pneg %p61
        $region18: #{tpu_custom_call.1} parent=11 // pred_check_branch
          %154 = sbr.rel (%p152) target = $region20
        $region19: #{tpu_custom_call.1} parent=11 // pred_region
          _
        $region20: #{tpu_custom_call.1} parent=11 // pred_fallthru
          _
        // Predicated region
        $region21: #{tpu_custom_call.1} parent=11 // pred_check
          %p155 = pneg %p82
        $region22: #{tpu_custom_call.1} parent=11 // pred_check_branch
          %157 = sbr.rel (%p155) target = $region24
        $region23: #{tpu_custom_call.1} parent=11 // pred_region
          %159 = vsyncadd [#allocation5], 0
          %s160 = sshll.u32 %s2, 4
          %s161 = int_to_ptr.hbm [resolvable:$true] %s160
          %s162 = sshll.u32 [#allocation4], 4
          %s163 = int_to_ptr.vmem [resolvable:$true] %s162
          %168 = dma.hbm_to_vmem [thread:$0]  %s161, 2048, %s163, [#allocation5], 128, 128, 8
        $region24: #{tpu_custom_call.1} parent=11 // pred_fallthru
          _
      $region12: #{tpu_custom_call.1} parent=5 // pred_fallthru
        _
      %p169 = scmp.lt.s32.totalorder %s19, 2
      // Predicated region
      $region25: #{tpu_custom_call.1} parent=5 // pred_check
        %p170 = pneg %p169
      $region26: #{tpu_custom_call.1} parent=5 // pred_check_branch
        %172 = sbr.rel (%p170) target = $region28
      $region27: #{tpu_custom_call.1} parent=5 // pred_region
        // Predicated region
        $region29: #{tpu_custom_call.1} parent=27 // pred_check
          %p173 = pneg %p102
        $region30: #{tpu_custom_call.1} parent=27 // pred_check_branch
          %175 = sbr.rel (%p173) target = $region32
        $region31: #{tpu_custom_call.1} parent=27 // pred_region
          %s176 = sand.u32 %s92, 1
          %s177 = scalar_lea.sflag [#allocation8], %s176
          %s178 = sand.u32 %s92, 1
          %s179 = smul.addr %s178, 8
          %s180 = scalar_lea.vmem [#allocation7], %s179
          %182 = vsyncadd %s177, 0
          %s183 = smul.addr %s19, 8
          %s184 = scalar_lea.hbm %s3, %s183
          %s186 = sshll.u32 %s184, 4
          %s187 = int_to_ptr.hbm [resolvable:$true] %s186
          %s188 = sshll.u32 %s180, 4
          %s189 = int_to_ptr.vmem [resolvable:$true] %s188
          %191 = dma.hbm_to_vmem [thread:$0]  %s187, 128, %s189, %s177
        $region32: #{tpu_custom_call.1} parent=27 // pred_fallthru
          _
      $region28: #{tpu_custom_call.1} parent=5 // pred_fallthru
        _
      %p192 = scmp.le.s32.totalorder 1, %s19
      %p193 = scmp.lt.s32.totalorder %s19, 3
      %p194 = pnand %p192, %p193
      %p195 = pneg %p194
      // Predicated region
      $region33: #{tpu_custom_call.1} parent=5 // pred_check
        _
      $region34: #{tpu_custom_call.1} parent=5 // pred_check_branch
        %197 = sbr.rel (%p194) target = $region36
      $region35: #{tpu_custom_call.1} parent=5 // pred_region
        %s198 = ssub.s32 %s19, 1
        // Predicated region
        $region37: #{tpu_custom_call.1} parent=35 // pred_check
          %p199 = pneg %p82
        $region38: #{tpu_custom_call.1} parent=35 // pred_check_branch
          %201 = sbr.rel (%p199) target = $region40
        $region39: #{tpu_custom_call.1} parent=35 // pred_region
          %203 = dma.done [#allocation5], 2048
        $region40: #{tpu_custom_call.1} parent=35 // pred_fallthru
          _
        %s204 = sand.u32 %s95, 1
        %s205 = scalar_lea.sflag [#allocation8], %s204
        %s206 = sand.u32 %s95, 1
        %s207 = smul.addr %s206, 8
        %s208 = scalar_lea.vmem [#allocation7], %s207
        // Predicated region
        $region41: #{tpu_custom_call.1} parent=35 // pred_check
          %p209 = pneg %p108
        $region42: #{tpu_custom_call.1} parent=35 // pred_check_branch
          %211 = sbr.rel (%p209) target = $region44
        $region43: #{tpu_custom_call.1} parent=35 // pred_region
          %213 = dma.done %s205, 128
        $region44: #{tpu_custom_call.1} parent=35 // pred_fallthru
          _
        %p214 = pneg %p40
        %p215 = pneg %p37
        %p216 = pneg %p61
        %p217 = pneg %p58
        %p218 = pneg %p82
        %p219 = pneg %p79
        %s220 = sand.u32 %s95, 1
        %s221 = scalar_lea.sflag [#allocation8], %s220
        %s222 = sand.u32 %s95, 1
        %s223 = smul.addr %s222, 8
        %s224 = scalar_lea.vmem [#allocation7], %s223
        %p225 = pneg %p108
        %p226 = pneg %p105
        %p227 = pneg %p134
        %p228 = pneg %p131
        %s229 = sand.u32 %s121, 1
        %s230 = scalar_lea.sflag [#allocation6], %s229
        %s231 = sand.u32 %s121, 1
        %s232 = smul.addr %s231, 8
        %s233 = scalar_lea.vmem [#allocation9], %s232
        %v234 = vld [vmem:[%s208] sm:$0xff]
        %v235 = vld [vmem:[#allocation4] sm:$0xff]
        %v236 = vld [vmem:[#allocation4 + $0x8] sm:$0xff]
        %v237 = vld [vmem:[#allocation4 + $0x10] sm:$0xff]
        %v238 = vld [vmem:[#allocation4 + $0x18] sm:$0xff]
        %v239 = vld [vmem:[#allocation4 + $0x20] sm:$0xff]
        %v240 = vld [vmem:[#allocation4 + $0x28] sm:$0xff]
        %v241 = vld [vmem:[#allocation4 + $0x30] sm:$0xff]
        %v242 = vld [vmem:[#allocation4 + $0x38] sm:$0xff]
        %v243 = vld [vmem:[#allocation4 + $0x40] sm:$0xff]
        %v244 = vld [vmem:[#allocation4 + $0x48] sm:$0xff]
        %v245 = vld [vmem:[#allocation4 + $0x50] sm:$0xff]
        %v246 = vld [vmem:[#allocation4 + $0x58] sm:$0xff]
        %v247 = vld [vmem:[#allocation4 + $0x60] sm:$0xff]
        %v248 = vld [vmem:[#allocation4 + $0x68] sm:$0xff]
        %v249 = vld [vmem:[#allocation4 + $0x70] sm:$0xff]
        %v250 = vld [vmem:[#allocation4 + $0x78] sm:$0xff]
        %v251 = vand.u32 %v250, 4294901760
        %252 = vmatpush.msra.mxu0 %v251
        %v253 = vand.u32 %v249, 4294901760
        %254 = vmatpush.msra.mxu0 %v253
        %v255 = vand.u32 %v248, 4294901760
        %256 = vmatpush.msra.mxu0 %v255
        %v257 = vand.u32 %v247, 4294901760
        %258 = vmatpush.msra.mxu0 %v257
        %v259 = vand.u32 %v246, 4294901760
        %260 = vmatpush.msra.mxu0 %v259
        %v261 = vand.u32 %v245, 4294901760
        %262 = vmatpush.msra.mxu0 %v261
        %v263 = vand.u32 %v244, 4294901760
        %264 = vmatpush.msra.mxu0 %v263
        %v265 = vand.u32 %v243, 4294901760
        %266 = vmatpush.msra.mxu0 %v265
        %v267 = vand.u32 %v242, 4294901760
        %268 = vmatpush.msra.mxu0 %v267
        %v269 = vand.u32 %v241, 4294901760
        %270 = vmatpush.msra.mxu0 %v269
        %v271 = vand.u32 %v240, 4294901760
        %272 = vmatpush.msra.mxu0 %v271
        %v273 = vand.u32 %v239, 4294901760
        %274 = vmatpush.msra.mxu0 %v273
        %v275 = vand.u32 %v238, 4294901760
        %276 = vmatpush.msra.mxu0 %v275
        %v277 = vand.u32 %v237, 4294901760
        %278 = vmatpush.msra.mxu0 %v277
        %v279 = vand.u32 %v236, 4294901760
        %280 = vmatpush.msra.mxu0 %v279
        %v281 = vand.u32 %v235, 4294901760
        %282 = vmatpush.msra.mxu0 %v281
        %v283 = vand.u32 %v234, 4294901760
        %v284 = vsub.f32 %v234, %v283
        %v285 = vand.u32 %v284, 4294901760
        %v286 = vsub.f32 %v284, %v285
        %v287 = vand.u32 %v286, 4294901760
        %288 = vmatmul.f32.gmra.mxu0 %v287
        %v289 = vpop.f32.mrf.mxu0
        %v290 = vadd.f32 0.0, %v289
        %291 = vdwg.mxu0
        %v292 = vand.u32 %v250, 4294901760
        %v293 = vsub.f32 %v250, %v292
        %v294 = vand.u32 %v293, 4294901760
        %v295 = vsub.f32 %v293, %v294
        %v296 = vand.u32 %v295, 4294901760
        %297 = vmatpush.msra.mxu0 %v296
        %v298 = vand.u32 %v249, 4294901760
        %v299 = vsub.f32 %v249, %v298
        %v300 = vand.u32 %v299, 4294901760
        %v301 = vsub.f32 %v299, %v300
        %v302 = vand.u32 %v301, 4294901760
        %303 = vmatpush.msra.mxu0 %v302
        %v304 = vand.u32 %v248, 4294901760
        %v305 = vsub.f32 %v248, %v304
        %v306 = vand.u32 %v305, 4294901760
        %v307 = vsub.f32 %v305, %v306
        %v308 = vand.u32 %v307, 4294901760
        %309 = vmatpush.msra.mxu0 %v308
        %v310 = vand.u32 %v247, 4294901760
        %v311 = vsub.f32 %v247, %v310
        %v312 = vand.u32 %v311, 4294901760
        %v313 = vsub.f32 %v311, %v312
        %v314 = vand.u32 %v313, 4294901760
        %315 = vmatpush.msra.mxu0 %v314
        %v316 = vand.u32 %v246, 4294901760
        %v317 = vsub.f32 %v246, %v316
        %v318 = vand.u32 %v317, 4294901760
        %v319 = vsub.f32 %v317, %v318
        %v320 = vand.u32 %v319, 4294901760
        %321 = vmatpush.msra.mxu0 %v320
        %v322 = vand.u32 %v245, 4294901760
        %v323 = vsub.f32 %v245, %v322
        %v324 = vand.u32 %v323, 4294901760
        %v325 = vsub.f32 %v323, %v324
        %v326 = vand.u32 %v325, 4294901760
        %327 = vmatpush.msra.mxu0 %v326
        %v328 = vand.u32 %v244, 4294901760
        %v329 = vsub.f32 %v244, %v328
        %v330 = vand.u32 %v329, 4294901760
        %v331 = vsub.f32 %v329, %v330
        %v332 = vand.u32 %v331, 4294901760
        %333 = vmatpush.msra.mxu0 %v332
        %v334 = vand.u32 %v243, 4294901760
        %v335 = vsub.f32 %v243, %v334
        %v336 = vand.u32 %v335, 4294901760
        %v337 = vsub.f32 %v335, %v336
        %v338 = vand.u32 %v337, 4294901760
        %339 = vmatpush.msra.mxu0 %v338
        %v340 = vand.u32 %v242, 4294901760
        %v341 = vsub.f32 %v242, %v340
        %v342 = vand.u32 %v341, 4294901760
        %v343 = vsub.f32 %v341, %v342
        %v344 = vand.u32 %v343, 4294901760
        %345 = vmatpush.msra.mxu0 %v344
        %v346 = vand.u32 %v241, 4294901760
        %v347 = vsub.f32 %v241, %v346
        %v348 = vand.u32 %v347, 4294901760
        %v349 = vsub.f32 %v347, %v348
        %v350 = vand.u32 %v349, 4294901760
        %351 = vmatpush.msra.mxu0 %v350
        %v352 = vand.u32 %v240, 4294901760
        %v353 = vsub.f32 %v240, %v352
        %v354 = vand.u32 %v353, 4294901760
        %v355 = vsub.f32 %v353, %v354
        %v356 = vand.u32 %v355, 4294901760
        %357 = vmatpush.msra.mxu0 %v356
        %v358 = vand.u32 %v239, 4294901760
        %v359 = vsub.f32 %v239, %v358
        %v360 = vand.u32 %v359, 4294901760
        %v361 = vsub.f32 %v359, %v360
        %v362 = vand.u32 %v361, 4294901760
        %363 = vmatpush.msra.mxu0 %v362
        %v364 = vand.u32 %v238, 4294901760
        %v365 = vsub.f32 %v238, %v364
        %v366 = vand.u32 %v365, 4294901760
        %v367 = vsub.f32 %v365, %v366
        %v368 = vand.u32 %v367, 4294901760
        %369 = vmatpush.msra.mxu0 %v368
        %v370 = vand.u32 %v237, 4294901760
        %v371 = vsub.f32 %v237, %v370
        %v372 = vand.u32 %v371, 4294901760
        %v373 = vsub.f32 %v371, %v372
        %v374 = vand.u32 %v373, 4294901760
        %375 = vmatpush.msra.mxu0 %v374
        %v376 = vand.u32 %v236, 4294901760
        %v377 = vsub.f32 %v236, %v376
        %v378 = vand.u32 %v377, 4294901760
        %v379 = vsub.f32 %v377, %v378
        %v380 = vand.u32 %v379, 4294901760
        %381 = vmatpush.msra.mxu0 %v380
        %v382 = vand.u32 %v235, 4294901760
        %v383 = vsub.f32 %v235, %v382
        %v384 = vand.u32 %v383, 4294901760
        %v385 = vsub.f32 %v383, %v384
        %v386 = vand.u32 %v385, 4294901760
        %387 = vmatpush.msra.mxu0 %v386
        %v388 = vand.u32 %v234, 4294901760
        %389 = vmatmul.f32.gmra.mxu0 %v388
        %v390 = vpop.f32.mrf.mxu0
        %v391 = vadd.f32 %v290, %v390
        %392 = vdwg.mxu0
        %v393 = vand.u32 %v250, 4294901760
        %v394 = vsub.f32 %v250, %v393
        %395 = vmatpush.msra.mxu0 %v394
        %v396 = vand.u32 %v249, 4294901760
        %v397 = vsub.f32 %v249, %v396
        %398 = vmatpush.msra.mxu0 %v397
        %v399 = vand.u32 %v248, 4294901760
        %v400 = vsub.f32 %v248, %v399
        %401 = vmatpush.msra.mxu0 %v400
        %v402 = vand.u32 %v247, 4294901760
        %v403 = vsub.f32 %v247, %v402
        %404 = vmatpush.msra.mxu0 %v403
        %v405 = vand.u32 %v246, 4294901760
        %v406 = vsub.f32 %v246, %v405
        %407 = vmatpush.msra.mxu0 %v406
        %v408 = vand.u32 %v245, 4294901760
        %v409 = vsub.f32 %v245, %v408
        %410 = vmatpush.msra.mxu0 %v409
        %v411 = vand.u32 %v244, 4294901760
        %v412 = vsub.f32 %v244, %v411
        %413 = vmatpush.msra.mxu0 %v412
        %v414 = vand.u32 %v243, 4294901760
        %v415 = vsub.f32 %v243, %v414
        %416 = vmatpush.msra.mxu0 %v415
        %v417 = vand.u32 %v242, 4294901760
        %v418 = vsub.f32 %v242, %v417
        %419 = vmatpush.msra.mxu0 %v418
        %v420 = vand.u32 %v241, 4294901760
        %v421 = vsub.f32 %v241, %v420
        %422 = vmatpush.msra.mxu0 %v421
        %v423 = vand.u32 %v240, 4294901760
        %v424 = vsub.f32 %v240, %v423
        %425 = vmatpush.msra.mxu0 %v424
        %v426 = vand.u32 %v239, 4294901760
        %v427 = vsub.f32 %v239, %v426
        %428 = vmatpush.msra.mxu0 %v427
        %v429 = vand.u32 %v238, 4294901760
        %v430 = vsub.f32 %v238, %v429
        %431 = vmatpush.msra.mxu0 %v430
        %v432 = vand.u32 %v237, 4294901760
        %v433 = vsub.f32 %v237, %v432
        %434 = vmatpush.msra.mxu0 %v433
        %v435 = vand.u32 %v236, 4294901760
        %v436 = vsub.f32 %v236, %v435
        %437 = vmatpush.msra.mxu0 %v436
        %v438 = vand.u32 %v235, 4294901760
        %v439 = vsub.f32 %v235, %v438
        %440 = vmatpush.msra.mxu0 %v439
        %v441 = vand.u32 %v234, 4294901760
        %v442 = vsub.f32 %v234, %v441
        %443 = vmatmul.f32.gmra.mxu0 %v442
        %v444 = vpop.f32.mrf.mxu0
        %v445 = vadd.f32 %v391, %v444
        %446 = vdwg.mxu0
        %v447 = vand.u32 %v250, 4294901760
        %448 = vmatpush.msra.mxu0 %v447
        %v449 = vand.u32 %v249, 4294901760
        %450 = vmatpush.msra.mxu0 %v449
        %v451 = vand.u32 %v248, 4294901760
        %452 = vmatpush.msra.mxu0 %v451
        %v453 = vand.u32 %v247, 4294901760
        %454 = vmatpush.msra.mxu0 %v453
        %v455 = vand.u32 %v246, 4294901760
        %456 = vmatpush.msra.mxu0 %v455
        %v457 = vand.u32 %v245, 4294901760
        %458 = vmatpush.msra.mxu0 %v457
        %v459 = vand.u32 %v244, 4294901760
        %460 = vmatpush.msra.mxu0 %v459
        %v461 = vand.u32 %v243, 4294901760
        %462 = vmatpush.msra.mxu0 %v461
        %v463 = vand.u32 %v242, 4294901760
        %464 = vmatpush.msra.mxu0 %v463
        %v465 = vand.u32 %v241, 4294901760
        %466 = vmatpush.msra.mxu0 %v465
        %v467 = vand.u32 %v240, 4294901760
        %468 = vmatpush.msra.mxu0 %v467
        %v469 = vand.u32 %v239, 4294901760
        %470 = vmatpush.msra.mxu0 %v469
        %v471 = vand.u32 %v238, 4294901760
        %472 = vmatpush.msra.mxu0 %v471
        %v473 = vand.u32 %v237, 4294901760
        %474 = vmatpush.msra.mxu0 %v473
        %v475 = vand.u32 %v236, 4294901760
        %476 = vmatpush.msra.mxu0 %v475
        %v477 = vand.u32 %v235, 4294901760
        %478 = vmatpush.msra.mxu0 %v477
        %v479 = vand.u32 %v234, 4294901760
        %v480 = vsub.f32 %v234, %v479
        %v481 = vand.u32 %v480, 4294901760
        %482 = vmatmul.f32.gmra.mxu0 %v481
        %v483 = vpop.f32.mrf.mxu0
        %v484 = vadd.f32 %v445, %v483
        %485 = vdwg.mxu0
        %v486 = vand.u32 %v250, 4294901760
        %v487 = vsub.f32 %v250, %v486
        %v488 = vand.u32 %v487, 4294901760
        %489 = vmatpush.msra.mxu0 %v488
        %v490 = vand.u32 %v249, 4294901760
        %v491 = vsub.f32 %v249, %v490
        %v492 = vand.u32 %v491, 4294901760
        %493 = vmatpush.msra.mxu0 %v492
        %v494 = vand.u32 %v248, 4294901760
        %v495 = vsub.f32 %v248, %v494
        %v496 = vand.u32 %v495, 4294901760
        %497 = vmatpush.msra.mxu0 %v496
        %v498 = vand.u32 %v247, 4294901760
        %v499 = vsub.f32 %v247, %v498
        %v500 = vand.u32 %v499, 4294901760
        %501 = vmatpush.msra.mxu0 %v500
        %v502 = vand.u32 %v246, 4294901760
        %v503 = vsub.f32 %v246, %v502
        %v504 = vand.u32 %v503, 4294901760
        %505 = vmatpush.msra.mxu0 %v504
        %v506 = vand.u32 %v245, 4294901760
        %v507 = vsub.f32 %v245, %v506
        %v508 = vand.u32 %v507, 4294901760
        %509 = vmatpush.msra.mxu0 %v508
        %v510 = vand.u32 %v244, 4294901760
        %v511 = vsub.f32 %v244, %v510
        %v512 = vand.u32 %v511, 4294901760
        %513 = vmatpush.msra.mxu0 %v512
        %v514 = vand.u32 %v243, 4294901760
        %v515 = vsub.f32 %v243, %v514
        %v516 = vand.u32 %v515, 4294901760
        %517 = vmatpush.msra.mxu0 %v516
        %v518 = vand.u32 %v242, 4294901760
        %v519 = vsub.f32 %v242, %v518
        %v520 = vand.u32 %v519, 4294901760
        %521 = vmatpush.msra.mxu0 %v520
        %v522 = vand.u32 %v241, 4294901760
        %v523 = vsub.f32 %v241, %v522
        %v524 = vand.u32 %v523, 4294901760
        %525 = vmatpush.msra.mxu0 %v524
        %v526 = vand.u32 %v240, 4294901760
        %v527 = vsub.f32 %v240, %v526
        %v528 = vand.u32 %v527, 4294901760
        %529 = vmatpush.msra.mxu0 %v528
        %v530 = vand.u32 %v239, 4294901760
        %v531 = vsub.f32 %v239, %v530
        %v532 = vand.u32 %v531, 4294901760
        %533 = vmatpush.msra.mxu0 %v532
        %v534 = vand.u32 %v238, 4294901760
        %v535 = vsub.f32 %v238, %v534
        %v536 = vand.u32 %v535, 4294901760
        %537 = vmatpush.msra.mxu0 %v536
        %v538 = vand.u32 %v237, 4294901760
        %v539 = vsub.f32 %v237, %v538
        %v540 = vand.u32 %v539, 4294901760
        %541 = vmatpush.msra.mxu0 %v540
        %v542 = vand.u32 %v236, 4294901760
        %v543 = vsub.f32 %v236, %v542
        %v544 = vand.u32 %v543, 4294901760
        %545 = vmatpush.msra.mxu0 %v544
        %v546 = vand.u32 %v235, 4294901760
        %v547 = vsub.f32 %v235, %v546
        %v548 = vand.u32 %v547, 4294901760
        %549 = vmatpush.msra.mxu0 %v548
        %v550 = vand.u32 %v234, 4294901760
        %551 = vmatmul.f32.gmra.mxu0 %v550
        %v552 = vpop.f32.mrf.mxu0
        %v553 = vadd.f32 %v484, %v552
        %554 = vdwg.mxu0
        %v555 = vand.u32 %v250, 4294901760
        %556 = vmatpush.msra.mxu0 %v555
        %v557 = vand.u32 %v249, 4294901760
        %558 = vmatpush.msra.mxu0 %v557
        %v559 = vand.u32 %v248, 4294901760
        %560 = vmatpush.msra.mxu0 %v559
        %v561 = vand.u32 %v247, 4294901760
        %562 = vmatpush.msra.mxu0 %v561
        %v563 = vand.u32 %v246, 4294901760
        %564 = vmatpush.msra.mxu0 %v563
        %v565 = vand.u32 %v245, 4294901760
        %566 = vmatpush.msra.mxu0 %v565
        %v567 = vand.u32 %v244, 4294901760
        %568 = vmatpush.msra.mxu0 %v567
        %v569 = vand.u32 %v243, 4294901760
        %570 = vmatpush.msra.mxu0 %v569
        %v571 = vand.u32 %v242, 4294901760
        %572 = vmatpush.msra.mxu0 %v571
        %v573 = vand.u32 %v241, 4294901760
        %574 = vmatpush.msra.mxu0 %v573
        %v575 = vand.u32 %v240, 4294901760
        %576 = vmatpush.msra.mxu0 %v575
        %v577 = vand.u32 %v239, 4294901760
        %578 = vmatpush.msra.mxu0 %v577
        %v579 = vand.u32 %v238, 4294901760
        %580 = vmatpush.msra.mxu0 %v579
        %v581 = vand.u32 %v237, 4294901760
        %582 = vmatpush.msra.mxu0 %v581
        %v583 = vand.u32 %v236, 4294901760
        %584 = vmatpush.msra.mxu0 %v583
        %v585 = vand.u32 %v235, 4294901760
        %586 = vmatpush.msra.mxu0 %v585
        %v587 = vand.u32 %v234, 4294901760
        %588 = vmatmul.f32.gmra.mxu0 %v587
        %v589 = vpop.f32.mrf.mxu0
        %v590 = vadd.f32 %v553, %v589
        %591 = vdwg.mxu0
        %v592 = vmul.f32 %v590, 0.03125
        %v593 = vsub.f32 %v234, %v592
        %v594 = vmul.f32 %v593, %v593
        %v595 = vand.u32 %v250, 4294901760
        %596 = vmatpush.msra.mxu0 %v595
        %v597 = vand.u32 %v249, 4294901760
        %598 = vmatpush.msra.mxu0 %v597
        %v599 = vand.u32 %v248, 4294901760
        %600 = vmatpush.msra.mxu0 %v599
        %v601 = vand.u32 %v247, 4294901760
        %602 = vmatpush.msra.mxu0 %v601
        %v603 = vand.u32 %v246, 4294901760
        %604 = vmatpush.msra.mxu0 %v603
        %v605 = vand.u32 %v245, 4294901760
        %606 = vmatpush.msra.mxu0 %v605
        %v607 = vand.u32 %v244, 4294901760
        %608 = vmatpush.msra.mxu0 %v607
        %v609 = vand.u32 %v243, 4294901760
        %610 = vmatpush.msra.mxu0 %v609
        %v611 = vand.u32 %v242, 4294901760
        %612 = vmatpush.msra.mxu0 %v611
        %v613 = vand.u32 %v241, 4294901760
        %614 = vmatpush.msra.mxu0 %v613
        %v615 = vand.u32 %v240, 4294901760
        %616 = vmatpush.msra.mxu0 %v615
        %v617 = vand.u32 %v239, 4294901760
        %618 = vmatpush.msra.mxu0 %v617
        %v619 = vand.u32 %v238, 4294901760
        %620 = vmatpush.msra.mxu0 %v619
        %v621 = vand.u32 %v237, 4294901760
        %622 = vmatpush.msra.mxu0 %v621
        %v623 = vand.u32 %v236, 4294901760
        %624 = vmatpush.msra.mxu0 %v623
        %v625 = vand.u32 %v235, 4294901760
        %626 = vmatpush.msra.mxu0 %v625
        %v627 = vand.u32 %v594, 4294901760
        %v628 = vsub.f32 %v594, %v627
        %v629 = vand.u32 %v628, 4294901760
        %v630 = vsub.f32 %v628, %v629
        %v631 = vand.u32 %v630, 4294901760
        %632 = vmatmul.f32.gmra.mxu0 %v631
        %v633 = vpop.f32.mrf.mxu0
        %v634 = vadd.f32 0.0, %v633
        %635 = vdwg.mxu0
        %v636 = vand.u32 %v250, 4294901760
        %v637 = vsub.f32 %v250, %v636
        %v638 = vand.u32 %v637, 4294901760
        %v639 = vsub.f32 %v637, %v638
        %v640 = vand.u32 %v639, 4294901760
        %641 = vmatpush.msra.mxu0 %v640
        %v642 = vand.u32 %v249, 4294901760
        %v643 = vsub.f32 %v249, %v642
        %v644 = vand.u32 %v643, 4294901760
        %v645 = vsub.f32 %v643, %v644
        %v646 = vand.u32 %v645, 4294901760
        %647 = vmatpush.msra.mxu0 %v646
        %v648 = vand.u32 %v248, 4294901760
        %v649 = vsub.f32 %v248, %v648
        %v650 = vand.u32 %v649, 4294901760
        %v651 = vsub.f32 %v649, %v650
        %v652 = vand.u32 %v651, 4294901760
        %653 = vmatpush.msra.mxu0 %v652
        %v654 = vand.u32 %v247, 4294901760
        %v655 = vsub.f32 %v247, %v654
        %v656 = vand.u32 %v655, 4294901760
        %v657 = vsub.f32 %v655, %v656
        %v658 = vand.u32 %v657, 4294901760
        %659 = vmatpush.msra.mxu0 %v658
        %v660 = vand.u32 %v246, 4294901760
        %v661 = vsub.f32 %v246, %v660
        %v662 = vand.u32 %v661, 4294901760
        %v663 = vsub.f32 %v661, %v662
        %v664 = vand.u32 %v663, 4294901760
        %665 = vmatpush.msra.mxu0 %v664
        %v666 = vand.u32 %v245, 4294901760
        %v667 = vsub.f32 %v245, %v666
        %v668 = vand.u32 %v667, 4294901760
        %v669 = vsub.f32 %v667, %v668
        %v670 = vand.u32 %v669, 4294901760
        %671 = vmatpush.msra.mxu0 %v670
        %v672 = vand.u32 %v244, 4294901760
        %v673 = vsub.f32 %v244, %v672
        %v674 = vand.u32 %v673, 4294901760
        %v675 = vsub.f32 %v673, %v674
        %v676 = vand.u32 %v675, 4294901760
        %677 = vmatpush.msra.mxu0 %v676
        %v678 = vand.u32 %v243, 4294901760
        %v679 = vsub.f32 %v243, %v678
        %v680 = vand.u32 %v679, 4294901760
        %v681 = vsub.f32 %v679, %v680
        %v682 = vand.u32 %v681, 4294901760
        %683 = vmatpush.msra.mxu0 %v682
        %v684 = vand.u32 %v242, 4294901760
        %v685 = vsub.f32 %v242, %v684
        %v686 = vand.u32 %v685, 4294901760
        %v687 = vsub.f32 %v685, %v686
        %v688 = vand.u32 %v687, 4294901760
        %689 = vmatpush.msra.mxu0 %v688
        %v690 = vand.u32 %v241, 4294901760
        %v691 = vsub.f32 %v241, %v690
        %v692 = vand.u32 %v691, 4294901760
        %v693 = vsub.f32 %v691, %v692
        %v694 = vand.u32 %v693, 4294901760
        %695 = vmatpush.msra.mxu0 %v694
        %v696 = vand.u32 %v240, 4294901760
        %v697 = vsub.f32 %v240, %v696
        %v698 = vand.u32 %v697, 4294901760
        %v699 = vsub.f32 %v697, %v698
        %v700 = vand.u32 %v699, 4294901760
        %701 = vmatpush.msra.mxu0 %v700
        %v702 = vand.u32 %v239, 4294901760
        %v703 = vsub.f32 %v239, %v702
        %v704 = vand.u32 %v703, 4294901760
        %v705 = vsub.f32 %v703, %v704
        %v706 = vand.u32 %v705, 4294901760
        %707 = vmatpush.msra.mxu0 %v706
        %v708 = vand.u32 %v238, 4294901760
        %v709 = vsub.f32 %v238, %v708
        %v710 = vand.u32 %v709, 4294901760
        %v711 = vsub.f32 %v709, %v710
        %v712 = vand.u32 %v711, 4294901760
        %713 = vmatpush.msra.mxu0 %v712
        %v714 = vand.u32 %v237, 4294901760
        %v715 = vsub.f32 %v237, %v714
        %v716 = vand.u32 %v715, 4294901760
        %v717 = vsub.f32 %v715, %v716
        %v718 = vand.u32 %v717, 4294901760
        %719 = vmatpush.msra.mxu0 %v718
        %v720 = vand.u32 %v236, 4294901760
        %v721 = vsub.f32 %v236, %v720
        %v722 = vand.u32 %v721, 4294901760
        %v723 = vsub.f32 %v721, %v722
        %v724 = vand.u32 %v723, 4294901760
        %725 = vmatpush.msra.mxu0 %v724
        %v726 = vand.u32 %v235, 4294901760
        %v727 = vsub.f32 %v235, %v726
        %v728 = vand.u32 %v727, 4294901760
        %v729 = vsub.f32 %v727, %v728
        %v730 = vand.u32 %v729, 4294901760
        %731 = vmatpush.msra.mxu0 %v730
        %v732 = vand.u32 %v594, 4294901760
        %733 = vmatmul.f32.gmra.mxu0 %v732
        %v734 = vpop.f32.mrf.mxu0
        %v735 = vadd.f32 %v634, %v734
        %736 = vdwg.mxu0
        %v737 = vand.u32 %v250, 4294901760
        %v738 = vsub.f32 %v250, %v737
        %739 = vmatpush.msra.mxu0 %v738
        %v740 = vand.u32 %v249, 4294901760
        %v741 = vsub.f32 %v249, %v740
        %742 = vmatpush.msra.mxu0 %v741
        %v743 = vand.u32 %v248, 4294901760
        %v744 = vsub.f32 %v248, %v743
        %745 = vmatpush.msra.mxu0 %v744
        %v746 = vand.u32 %v247, 4294901760
        %v747 = vsub.f32 %v247, %v746
        %748 = vmatpush.msra.mxu0 %v747
        %v749 = vand.u32 %v246, 4294901760
        %v750 = vsub.f32 %v246, %v749
        %751 = vmatpush.msra.mxu0 %v750
        %v752 = vand.u32 %v245, 4294901760
        %v753 = vsub.f32 %v245, %v752
        %754 = vmatpush.msra.mxu0 %v753
        %v755 = vand.u32 %v244, 4294901760
        %v756 = vsub.f32 %v244, %v755
        %757 = vmatpush.msra.mxu0 %v756
        %v758 = vand.u32 %v243, 4294901760
        %v759 = vsub.f32 %v243, %v758
        %760 = vmatpush.msra.mxu0 %v759
        %v761 = vand.u32 %v242, 4294901760
        %v762 = vsub.f32 %v242, %v761
        %763 = vmatpush.msra.mxu0 %v762
        %v764 = vand.u32 %v241, 4294901760
        %v765 = vsub.f32 %v241, %v764
        %766 = vmatpush.msra.mxu0 %v765
        %v767 = vand.u32 %v240, 4294901760
        %v768 = vsub.f32 %v240, %v767
        %769 = vmatpush.msra.mxu0 %v768
        %v770 = vand.u32 %v239, 4294901760
        %v771 = vsub.f32 %v239, %v770
        %772 = vmatpush.msra.mxu0 %v771
        %v773 = vand.u32 %v238, 4294901760
        %v774 = vsub.f32 %v238, %v773
        %775 = vmatpush.msra.mxu0 %v774
        %v776 = vand.u32 %v237, 4294901760
        %v777 = vsub.f32 %v237, %v776
        %778 = vmatpush.msra.mxu0 %v777
        %v779 = vand.u32 %v236, 4294901760
        %v780 = vsub.f32 %v236, %v779
        %781 = vmatpush.msra.mxu0 %v780
        %v782 = vand.u32 %v235, 4294901760
        %v783 = vsub.f32 %v235, %v782
        %784 = vmatpush.msra.mxu0 %v783
        %v785 = vand.u32 %v594, 4294901760
        %v786 = vsub.f32 %v594, %v785
        %787 = vmatmul.f32.gmra.mxu0 %v786
        %v788 = vpop.f32.mrf.mxu0
        %v789 = vadd.f32 %v735, %v788
        %790 = vdwg.mxu0
        %v791 = vand.u32 %v250, 4294901760
        %792 = vmatpush.msra.mxu0 %v791
        %v793 = vand.u32 %v249, 4294901760
        %794 = vmatpush.msra.mxu0 %v793
        %v795 = vand.u32 %v248, 4294901760
        %796 = vmatpush.msra.mxu0 %v795
        %v797 = vand.u32 %v247, 4294901760
        %798 = vmatpush.msra.mxu0 %v797
        %v799 = vand.u32 %v246, 4294901760
        %800 = vmatpush.msra.mxu0 %v799
        %v801 = vand.u32 %v245, 4294901760
        %802 = vmatpush.msra.mxu0 %v801
        %v803 = vand.u32 %v244, 4294901760
        %804 = vmatpush.msra.mxu0 %v803
        %v805 = vand.u32 %v243, 4294901760
        %806 = vmatpush.msra.mxu0 %v805
        %v807 = vand.u32 %v242, 4294901760
        %808 = vmatpush.msra.mxu0 %v807
        %v809 = vand.u32 %v241, 4294901760
        %810 = vmatpush.msra.mxu0 %v809
        %v811 = vand.u32 %v240, 4294901760
        %812 = vmatpush.msra.mxu0 %v811
        %v813 = vand.u32 %v239, 4294901760
        %814 = vmatpush.msra.mxu0 %v813
        %v815 = vand.u32 %v238, 4294901760
        %816 = vmatpush.msra.mxu0 %v815
        %v817 = vand.u32 %v237, 4294901760
        %818 = vmatpush.msra.mxu0 %v817
        %v819 = vand.u32 %v236, 4294901760
        %820 = vmatpush.msra.mxu0 %v819
        %v821 = vand.u32 %v235, 4294901760
        %822 = vmatpush.msra.mxu0 %v821
        %v823 = vand.u32 %v594, 4294901760
        %v824 = vsub.f32 %v594, %v823
        %v825 = vand.u32 %v824, 4294901760
        %826 = vmatmul.f32.gmra.mxu0 %v825
        %v827 = vpop.f32.mrf.mxu0
        %v828 = vadd.f32 %v789, %v827
        %829 = vdwg.mxu0
        %v830 = vand.u32 %v250, 4294901760
        %v831 = vsub.f32 %v250, %v830
        %v832 = vand.u32 %v831, 4294901760
        %833 = vmatpush.msra.mxu0 %v832
        %v834 = vand.u32 %v249, 4294901760
        %v835 = vsub.f32 %v249, %v834
        %v836 = vand.u32 %v835, 4294901760
        %837 = vmatpush.msra.mxu0 %v836
        %v838 = vand.u32 %v248, 4294901760
        %v839 = vsub.f32 %v248, %v838
        %v840 = vand.u32 %v839, 4294901760
        %841 = vmatpush.msra.mxu0 %v840
        %v842 = vand.u32 %v247, 4294901760
        %v843 = vsub.f32 %v247, %v842
        %v844 = vand.u32 %v843, 4294901760
        %845 = vmatpush.msra.mxu0 %v844
        %v846 = vand.u32 %v246, 4294901760
        %v847 = vsub.f32 %v246, %v846
        %v848 = vand.u32 %v847, 4294901760
        %849 = vmatpush.msra.mxu0 %v848
        %v850 = vand.u32 %v245, 4294901760
        %v851 = vsub.f32 %v245, %v850
        %v852 = vand.u32 %v851, 4294901760
        %853 = vmatpush.msra.mxu0 %v852
        %v854 = vand.u32 %v244, 4294901760
        %v855 = vsub.f32 %v244, %v854
        %v856 = vand.u32 %v855, 4294901760
        %857 = vmatpush.msra.mxu0 %v856
        %v858 = vand.u32 %v243, 4294901760
        %v859 = vsub.f32 %v243, %v858
        %v860 = vand.u32 %v859, 4294901760
        %861 = vmatpush.msra.mxu0 %v860
        %v862 = vand.u32 %v242, 4294901760
        %v863 = vsub.f32 %v242, %v862
        %v864 = vand.u32 %v863, 4294901760
        %865 = vmatpush.msra.mxu0 %v864
        %v866 = vand.u32 %v241, 4294901760
        %v867 = vsub.f32 %v241, %v866
        %v868 = vand.u32 %v867, 4294901760
        %869 = vmatpush.msra.mxu0 %v868
        %v870 = vand.u32 %v240, 4294901760
        %v871 = vsub.f32 %v240, %v870
        %v872 = vand.u32 %v871, 4294901760
        %873 = vmatpush.msra.mxu0 %v872
        %v874 = vand.u32 %v239, 4294901760
        %v875 = vsub.f32 %v239, %v874
        %v876 = vand.u32 %v875, 4294901760
        %877 = vmatpush.msra.mxu0 %v876
        %v878 = vand.u32 %v238, 4294901760
        %v879 = vsub.f32 %v238, %v878
        %v880 = vand.u32 %v879, 4294901760
        %881 = vmatpush.msra.mxu0 %v880
        %v882 = vand.u32 %v237, 4294901760
        %v883 = vsub.f32 %v237, %v882
        %v884 = vand.u32 %v883, 4294901760
        %885 = vmatpush.msra.mxu0 %v884
        %v886 = vand.u32 %v236, 4294901760
        %v887 = vsub.f32 %v236, %v886
        %v888 = vand.u32 %v887, 4294901760
        %889 = vmatpush.msra.mxu0 %v888
        %v890 = vand.u32 %v235, 4294901760
        %v891 = vsub.f32 %v235, %v890
        %v892 = vand.u32 %v891, 4294901760
        %893 = vmatpush.msra.mxu0 %v892
        %v894 = vand.u32 %v594, 4294901760
        %895 = vmatmul.f32.gmra.mxu0 %v894
        %v896 = vpop.f32.mrf.mxu0
        %v897 = vadd.f32 %v828, %v896
        %898 = vdwg.mxu0
        %v899 = vand.u32 %v250, 4294901760
        %900 = vmatpush.msra.mxu0 %v899
        %v901 = vand.u32 %v249, 4294901760
        %902 = vmatpush.msra.mxu0 %v901
        %v903 = vand.u32 %v248, 4294901760
        %904 = vmatpush.msra.mxu0 %v903
        %v905 = vand.u32 %v247, 4294901760
        %906 = vmatpush.msra.mxu0 %v905
        %v907 = vand.u32 %v246, 4294901760
        %908 = vmatpush.msra.mxu0 %v907
        %v909 = vand.u32 %v245, 4294901760
        %910 = vmatpush.msra.mxu0 %v909
        %v911 = vand.u32 %v244, 4294901760
        %912 = vmatpush.msra.mxu0 %v911
        %v913 = vand.u32 %v243, 4294901760
        %914 = vmatpush.msra.mxu0 %v913
        %v915 = vand.u32 %v242, 4294901760
        %916 = vmatpush.msra.mxu0 %v915
        %v917 = vand.u32 %v241, 4294901760
        %918 = vmatpush.msra.mxu0 %v917
        %v919 = vand.u32 %v240, 4294901760
        %920 = vmatpush.msra.mxu0 %v919
        %v921 = vand.u32 %v239, 4294901760
        %922 = vmatpush.msra.mxu0 %v921
        %v923 = vand.u32 %v238, 4294901760
        %924 = vmatpush.msra.mxu0 %v923
        %v925 = vand.u32 %v237, 4294901760
        %926 = vmatpush.msra.mxu0 %v925
        %v927 = vand.u32 %v236, 4294901760
        %928 = vmatpush.msra.mxu0 %v927
        %v929 = vand.u32 %v235, 4294901760
        %930 = vmatpush.msra.mxu0 %v929
        %v931 = vand.u32 %v594, 4294901760
        %932 = vmatmul.f32.gmra.mxu0 %v931
        %v933 = vpop.f32.mrf.mxu0
        %v934 = vadd.f32 %v897, %v933
        %935 = vdwg.mxu0
        %v936 = vmul.f32 %v934, 0.032258064
        %v937 = vrsqrt.pop %v936
        %v938 = vmul.f32 %v937, %v936
        %v939 = vmul.f32 %v938, %v937
        %v940 = vmul.f32 0.5, %v939
        %v941 = vsub.f32 1.5, %v940
        %v942 = vmul.f32 %v937, %v941
        %v943 = vmul.f32 %v936, %v942
        %vm944 = vcmp.eq.f32.partialorder %v936, inf
        %v945 = vsel %vm944, %v936, %v943
        %vm946 = vcmp.eq.f32.partialorder %v936, 0.0
        %v947 = vand.u32 %v936, 2147483648
        %v948 = vsel %vm946, %v947, %v945
        %v949 = vadd.f32 %v948, 1e-06
        %v950 = vrcp.pop %v949
        %v951 = vmul.f32 %v949, %v950
        %v952 = vsub.f32 1.0, %v951
        %v953 = vmul.f32 %v950, %v952
        %v954 = vadd.f32 %v950, %v953
        %vm955 = vweird.f32 %v949
        %vm956 = vweird.f32 %v950
        %vm957 = vmor %vm955, %vm956
        %v958 = vsel %vm957, %v950, %v954
        %v959 = vand.u32 2147483647, %v949
        %vm960 = vcmp.eq.f32.partialorder %v959, 8.507059e+37
        %v961 = vand.u32 %v949, 2147483648
        %v962 = vor.u32 1.1754944e-38, %v961
        %v963 = vsel %vm960, %v962, %v958
        %s964 = sld [smem:[#allocation2]]
        %v965 = vstv %s964
        %v966 = vmul.f32 %v965, %v963
        %v967 = vmul.f32 %v593, %v966
        %s968 = sld [smem:[#allocation3]]
        %v969 = vstv %s968
        %v970 = vadd.f32 %v967, %v969
        %971 = vst [vmem:[%s233] sm:$0xff] %v970
        %s972 = sand.u32 %s121, 1
        %s973 = scalar_lea.sflag [#allocation6], %s972
        %s974 = sand.u32 %s121, 1
        %s975 = smul.addr %s974, 8
        %s976 = scalar_lea.vmem [#allocation9], %s975
        // Predicated region
        $region45: #{tpu_custom_call.1} parent=35 // pred_check
          %p977 = pneg %p131
        $region46: #{tpu_custom_call.1} parent=35 // pred_check_branch
          %979 = sbr.rel (%p977) target = $region48
        $region47: #{tpu_custom_call.1} parent=35 // pred_region
          %981 = vsyncadd %s973, 0
          %s982 = smul.addr %s24, 8
          %s983 = scalar_lea.hbm %s4, %s982
          %s985 = sshll.u32 %s976, 4
          %s986 = int_to_ptr.vmem [resolvable:$true] %s985
          %s987 = sshll.u32 %s983, 4
          %s988 = int_to_ptr.hbm [resolvable:$true] %s987
          %990 = dma.vmem_to_hbm [thread:$0]  %s986, 128, %s988, %s973
        $region48: #{tpu_custom_call.1} parent=35 // pred_fallthru
          _
      $region36: #{tpu_custom_call.1} parent=5 // pred_fallthru
        _
      %p991 = scmp.le.s32.totalorder 2, %s19
      // Predicated region
      $region49: #{tpu_custom_call.1} parent=5 // pred_check
        %p992 = pneg %p991
      $region50: #{tpu_custom_call.1} parent=5 // pred_check_branch
        %994 = sbr.rel (%p992) target = $region52
      $region51: #{tpu_custom_call.1} parent=5 // pred_region
        %s995 = ssub.s32 %s19, 2
        // Predicated region
        $region53: #{tpu_custom_call.1} parent=51 // pred_check
          %p996 = pneg %p137
        $region54: #{tpu_custom_call.1} parent=51 // pred_check_branch
          %998 = sbr.rel (%p996) target = $region56
        $region55: #{tpu_custom_call.1} parent=51 // pred_region
          %s999 = sand.u32 %s122, 1
          %s1000 = scalar_lea.sflag [#allocation6], %s999
          %s1001 = sand.u32 %s122, 1
          %s1002 = smul.addr %s1001, 8
          %s1003 = scalar_lea.vmem [#allocation9], %s1002
          %1005 = dma.done %s1000, 128
        $region56: #{tpu_custom_call.1} parent=51 // pred_fallthru
          _
      $region52: #{tpu_custom_call.1} parent=5 // pred_fallthru
        _
    $region6: #{tpu_custom_call.1} parent=1 // loop_footer
      %s23 = sadd.s32 1, %s19
    $region7: #{tpu_custom_call.1} parent=1 // loop_footer_branch
      %18 = sbr.rel target = $region3
    $region8: #{tpu_custom_call.1} parent=1 // loop_exit
      _
    %1006 = vsyncpa [#allocation5], 1
    %s1007 = scalar_lea.sflag [#allocation5], 1
    %1008 = vsyncpa %s1007, 1
    %1009 = vsyncpa [#allocation8], 1
    %s1010 = scalar_lea.sflag [#allocation8], 1
    %1011 = vsyncpa %s1010, 1
    %1012 = vsyncpa [#allocation6], 1
    %s1013 = scalar_lea.sflag [#allocation6], 1
    %1014 = vsyncpa %s1013, 1

</llo_original>
